<compile_context>
chip_gen: v7x
topology: tpu7x:2x2x1
jax: 0.10.0
libtpu: 0.0.40
codegen_flags: <defaults>
</compile_context>

<pallas_src>
import math

import jax
import jax.numpy as jnp
from jax.experimental import pallas as pl
from jax.experimental.pallas import tpu as pltpu


def _normalize_kernel(x_ref, mean_ref, std_ref, o_ref):
    # x_ref: (block_rows, L); mean/std: (1, L) broadcast over rows.
    o_ref[...] = (x_ref[...] - mean_ref[...]) / std_ref[...]


def _lane_fold(d: int, lead: int, max_lanes: int = 2048) -> int:
    """Pick k so the folded lane width L = d*k is a multiple of 128
    (lane-dense), k divides the leading-row count, and L stays modest."""
    base = 128 // math.gcd(d, 128)
    if base * d > max_lanes or lead % base != 0:
        return 1
    k = base
    while k * 2 * d <= max_lanes and lead % (k * 2) == 0:
        k *= 2
    return k


def _choose_block_rows(rows: int, lanes: int, itemsize: int,
                       target_bytes: int = 2 << 20) -> int:
    """~2 MiB row tiles: double-buffered input + output fits every
    generation's default scoped-VMEM limit with headroom."""
    max_rows = max(1, target_bytes // max(1, lanes * itemsize))
    br = min(rows, max_rows, 1024)
    if br < rows:
        br = max(8, (br // 8) * 8)  # keep the sublane axis 8-aligned
    return br


def normalize_pallas(x: jax.Array, mean, std) -> jax.Array:
    """Pallas equivalent of Normalize.forward: (x - mean) / std."""
    orig_shape = x.shape
    dtype = x.dtype
    d = orig_shape[-1]
    total = math.prod(orig_shape)
    lead = total // d

    # TODO(synk): general PyTorch broadcast shapes for mean/std (e.g. [C,1,1])
    # are not handled; only scalar or length-d last-dim vectors.
    mean = jnp.broadcast_to(jnp.asarray(mean, dtype).reshape(-1), (d,))
    std = jnp.broadcast_to(jnp.asarray(std, dtype).reshape(-1), (d,))

    # Fold leading rows into the lane axis -> lane-dense last dim.
    k = _lane_fold(d, lead)
    lanes = d * k
    rows = lead // k

    x2 = x.reshape(rows, lanes)                 # metadata-only reshape
    mean2 = jnp.tile(mean, k).reshape(1, lanes)
    std2 = jnp.tile(std, k).reshape(1, lanes)

    block_rows = _choose_block_rows(rows, lanes, x2.dtype.itemsize)
    grid = (pl.cdiv(rows, block_rows),)

    out2 = pl.pallas_call(
        _normalize_kernel,
        out_shape=jax.ShapeDtypeStruct((rows, lanes), dtype),
        grid=grid,
        in_specs=[
            pl.BlockSpec((block_rows, lanes), lambda i: (i, 0)),
            pl.BlockSpec((1, lanes), lambda i: (0, 0)),
            pl.BlockSpec((1, lanes), lambda i: (0, 0)),
        ],
        out_specs=pl.BlockSpec((block_rows, lanes), lambda i: (i, 0)),
        compiler_params=pltpu.CompilerParams(
            dimension_semantics=("parallel",)),
    )(x2, mean2, std2)

    return out2.reshape(orig_shape)


if __name__ == "__main__":
    key = jax.random.PRNGKey(0)
    kx, km, ks = jax.random.split(key, 3)

    # Small NCHW-style input [B, C, H, W]; per-last-dim mean/std.
    x = jax.random.normal(kx, (2, 4, 16, 16), dtype=jnp.float32)
    mean = jax.random.normal(km, (16,), dtype=jnp.float32)
    std = jax.random.uniform(ks, (16,), dtype=jnp.float32,
                             minval=0.5, maxval=2.0)

    y = normalize_pallas(x, mean, std)
    jax.block_until_ready(y)

    ref = (x - mean) / std
    assert y.shape == ref.shape, (y.shape, ref.shape)
    assert y.dtype == ref.dtype, (y.dtype, ref.dtype)
    assert bool(jnp.allclose(y, ref, rtol=1e-6, atol=1e-6)), float(
        jnp.max(jnp.abs(y - ref)))

    print("KERNEL_OK")
</pallas_src>

<mosaic_0001>
module attributes {stable_mosaic.version = 11 : i64} {
  func.func @_normalize_kernel(%arg0: i32, %arg1: memref<1x2048xf32, #tpu.memory_space<vmem>>, %arg2: memref<1x2048xf32, #tpu.memory_space<vmem>>, %arg3: memref<1x2048xf32, #tpu.memory_space<vmem>>, %arg4: memref<1x2048xf32, #tpu.memory_space<vmem>>) attributes {dimension_semantics = [#tpu.dimension_semantics<parallel>], iteration_bounds = array<i64: 1>, scalar_prefetch = 0 : i64, scratch_operands = 0 : i64, tpu.core_type = #tpu.core_type<tc>, window_params = [{transform_indices = @transform_0, window_bounds = array<i64: 1, 2048>}, {pipeline_mode = #tpu.pipeline_mode<synchronous>, transform_indices = @transform_1, window_bounds = array<i64: 1, 2048>}, {pipeline_mode = #tpu.pipeline_mode<synchronous>, transform_indices = @transform_2, window_bounds = array<i64: 1, 2048>}, {transform_indices = @transform_3, window_bounds = array<i64: 1, 2048>}]} {
    %c0 = arith.constant 0 : index
    %c0_0 = arith.constant 0 : index
    %0 = vector.load %arg1[%c0, %c0_0] : memref<1x2048xf32, #tpu.memory_space<vmem>>, vector<1x2048xf32>
    %c0_1 = arith.constant 0 : index
    %c0_2 = arith.constant 0 : index
    %1 = vector.load %arg2[%c0_1, %c0_2] : memref<1x2048xf32, #tpu.memory_space<vmem>>, vector<1x2048xf32>
    %2 = arith.subf %0, %1 : vector<1x2048xf32>
    %c0_3 = arith.constant 0 : index
    %c0_4 = arith.constant 0 : index
    %3 = vector.load %arg3[%c0_3, %c0_4] : memref<1x2048xf32, #tpu.memory_space<vmem>>, vector<1x2048xf32>
    %4 = arith.divf %2, %3 : vector<1x2048xf32>
    %c0_5 = arith.constant 0 : index
    %c0_6 = arith.constant 0 : index
    %5 = vector.load %arg4[%c0_5, %c0_6] : memref<1x2048xf32, #tpu.memory_space<vmem>>, vector<1x2048xf32>
    tpu.vector_store %arg4[%c0_5, %c0_6], %4 {strides = array<i32>} : memref<1x2048xf32, #tpu.memory_space<vmem>>, vector<1x2048xf32>,
    return
  }
  func.func @transform_0(%arg0: i32) -> (i32, i32) {
    %c0_i32 = arith.constant 0 : i32
    %c0_i32_0 = arith.constant 0 : i32
    return %arg0, %c0_i32 : i32, i32
  }
  func.func @transform_1(%arg0: i32) -> (i32, i32) {
    %c0_i32 = arith.constant 0 : i32
    %c0_i32_0 = arith.constant 0 : i32
    %c0_i32_1 = arith.constant 0 : i32
    return %c0_i32, %c0_i32_0 : i32, i32
  }
  func.func @transform_2(%arg0: i32) -> (i32, i32) {
    %c0_i32 = arith.constant 0 : i32
    %c0_i32_0 = arith.constant 0 : i32
    %c0_i32_1 = arith.constant 0 : i32
    return %c0_i32, %c0_i32_0 : i32, i32
  }
  func.func @transform_3(%arg0: i32) -> (i32, i32) {
    %c0_i32 = arith.constant 0 : i32
    %c0_i32_0 = arith.constant 0 : i32
    return %arg0, %c0_i32 : i32, i32
  }
}

</mosaic_0001>

<llo_original>
// kernel: tpu_custom_call.1
$region0: #{tpu_custom_call.1}
  #allocation0 [shape = 'u32[]', space=smem, size = 0x4, offset = 0x4, fixed_abs, tag = 'smem constant byte address 0x4 - core index']
  #allocation1 [shape = 'u32[144,128]{1,0:T(1,128)}', space=vmem, size = 0x12000, scoped, tag = 'internal scratch']
  %s0 = inlined_call_operand.hbm [shape: f32[1,2048], index: 0, kind: input, shape index: {}]
  %s1 = inlined_call_operand.hbm [shape: f32[1,2048], index: 1, kind: input, shape index: {}]
  %s2 = inlined_call_operand.hbm [shape: f32[1,2048], index: 2, kind: input, shape index: {}]
  %s3 = inlined_call_operand.hbm [shape: f32[1,2048], index: 3, kind: output, shape index: {}]
  %s4 = sld [smem:[#allocation0]]
  $region34: #{tpu_custom_call.1} parent=0
    _
  %s6 = ssub.s32 1, %s4
  %s7 = scalar_select 0, %s6, %s4
  $region1: #{tpu_custom_call.1} parent=0
    #allocation2 [shape = 'u8[8192]{0}', space=vmem, size = 0x2000, scoped, tag = 'input window, operand 0, single buffered']
    #allocation3 [shape = 's32[1]{0}', space=sflag, size = 0x4, scoped, tag = 'scoped memory for tpu_custom_call.1']
    #allocation4 [shape = 's32[1]{0}', space=sflag, size = 0x4, scoped, tag = 'scoped memory for tpu_custom_call.1']
    #allocation5 [shape = 'u8[8192]{0}', space=vmem, size = 0x2000, scoped, tag = 'input window, operand 1, single buffered']
    #allocation6 [shape = 's32[1]{0}', space=sflag, size = 0x4, scoped, tag = 'scoped memory for tpu_custom_call.1']
    #allocation7 [shape = 'u8[8192]{0}', space=vmem, size = 0x2000, scoped, tag = 'input window, operand 2, single buffered']
    #allocation8 [shape = 'u8[8192]{0}', space=vmem, size = 0x2000, scoped, tag = 'output window, operand 0, single buffered']
    %8 = vsyncpa [#allocation3], 0
    %9 = vsyncpa [#allocation6], 0
    %10 = vsyncpa [#allocation4], 0
    // Predicated region
    $region2: #{tpu_custom_call.1} parent=1 // pred_check
      _
    $region3: #{tpu_custom_call.1} parent=1 // pred_check_branch
      %12 = sbr.rel (0) target = $region5
    $region4: #{tpu_custom_call.1} parent=1 // pred_region
      %s14 = ssub.s32 256, 256
      %15 = vsyncadd [#allocation3], %s14
      %s17 = sshll.u32 [#allocation2], 4
      %s18 = int_to_ptr.vmem [resolvable:$true] %s17
      %20 = dma.hbm_to_vmem [thread:$0]  %s0, 256, %s18, [#allocation3]
    $region5: #{tpu_custom_call.1} parent=1 // pred_fallthru
      _
    // Predicated region
    $region6: #{tpu_custom_call.1} parent=1 // pred_check
      _
    $region7: #{tpu_custom_call.1} parent=1 // pred_check_branch
      %22 = sbr.rel (0) target = $region9
    $region8: #{tpu_custom_call.1} parent=1 // pred_region
      %s24 = ssub.s32 256, 256
      %25 = vsyncadd [#allocation6], %s24
      %s27 = sshll.u32 [#allocation5], 4
      %s28 = int_to_ptr.vmem [resolvable:$true] %s27
      %30 = dma.hbm_to_vmem [thread:$0]  %s1, 256, %s28, [#allocation6]
    $region9: #{tpu_custom_call.1} parent=1 // pred_fallthru
      _
    // Predicated region
    $region10: #{tpu_custom_call.1} parent=1 // pred_check
      _
    $region11: #{tpu_custom_call.1} parent=1 // pred_check_branch
      %32 = sbr.rel (0) target = $region13
    $region12: #{tpu_custom_call.1} parent=1 // pred_region
      %s34 = ssub.s32 256, 256
      %35 = vsyncadd [#allocation6], %s34
      %s37 = sshll.u32 [#allocation7], 4
      %s38 = int_to_ptr.vmem [resolvable:$true] %s37
      %40 = dma.hbm_to_vmem [thread:$0]  %s2, 256, %s38, [#allocation6]
    $region13: #{tpu_custom_call.1} parent=1 // pred_fallthru
      _
    // Predicated region
    $region14: #{tpu_custom_call.1} parent=1 // pred_check
      _
    $region15: #{tpu_custom_call.1} parent=1 // pred_check_branch
      %42 = sbr.rel (0) target = $region17
    $region16: #{tpu_custom_call.1} parent=1 // pred_region
      %43 = dma.done [#allocation3], 256
    $region17: #{tpu_custom_call.1} parent=1 // pred_fallthru
      _
    // Predicated region
    $region18: #{tpu_custom_call.1} parent=1 // pred_check
      _
    $region19: #{tpu_custom_call.1} parent=1 // pred_check_branch
      %45 = sbr.rel (0) target = $region21
    $region20: #{tpu_custom_call.1} parent=1 // pred_region
      %46 = dma.done [#allocation6], 256
    $region21: #{tpu_custom_call.1} parent=1 // pred_fallthru
      _
    // Predicated region
    $region22: #{tpu_custom_call.1} parent=1 // pred_check
      _
    $region23: #{tpu_custom_call.1} parent=1 // pred_check_branch
      %48 = sbr.rel (0) target = $region25
    $region24: #{tpu_custom_call.1} parent=1 // pred_region
      %49 = dma.done [#allocation6], 256
    $region25: #{tpu_custom_call.1} parent=1 // pred_fallthru
      _
    %v50 = vld [vmem:[#allocation2] sm:$0xff]
    %v51 = vld [vmem:[#allocation2 + $0x8] sm:$0xff]
    %v52 = vld [vmem:[#allocation5] sm:$0xff]
    %v53 = vld [vmem:[#allocation5 + $0x8] sm:$0xff]
    %v54 = vsub.f32 %v50, %v52
    %v55 = vsub.f32 %v51, %v53
    %v56 = vld [vmem:[#allocation7] sm:$0xff]
    %v57 = vld [vmem:[#allocation7 + $0x8] sm:$0xff]
    %v58 = vrcp.pop %v56
    %v59 = vmul.f32 %v54, %v58
    %v60 = vrcp.pop %v57
    %v61 = vmul.f32 %v55, %v60
    %62 = vst [vmem:[#allocation8] sm:$0xff] %v59
    %63 = vst [vmem:[#allocation8 + $0x8] sm:$0xff] %v61
    // Predicated region
    $region26: #{tpu_custom_call.1} parent=1 // pred_check
      _
    $region27: #{tpu_custom_call.1} parent=1 // pred_check_branch
      %65 = sbr.rel (0) target = $region29
    $region28: #{tpu_custom_call.1} parent=1 // pred_region
      %s67 = ssub.s32 256, 256
      %68 = vsyncadd [#allocation4], %s67
      %s70 = sshll.u32 [#allocation8], 4
      %s71 = int_to_ptr.vmem [resolvable:$true] %s70
      %73 = dma.vmem_to_hbm [thread:$0]  %s71, 256, %s3, [#allocation4]
    $region29: #{tpu_custom_call.1} parent=1 // pred_fallthru
      _
    // Predicated region
    $region30: #{tpu_custom_call.1} parent=1 // pred_check
      _
    $region31: #{tpu_custom_call.1} parent=1 // pred_check_branch
      %75 = sbr.rel (0) target = $region33
    $region32: #{tpu_custom_call.1} parent=1 // pred_region
      %76 = dma.done [#allocation4], 256
    $region33: #{tpu_custom_call.1} parent=1 // pred_fallthru
      _
    %77 = vsyncpa [#allocation3], 1
    %78 = vsyncpa [#allocation6], 1
    %79 = vsyncpa [#allocation4], 1

</llo_original>
